<compile_context>
chip_gen: v7x
topology: tpu7x:2x2x1
jax: 0.10.0
libtpu: 0.0.40
codegen_flags: <defaults>
</compile_context>

<pallas_src>
import functools

import jax
import jax.numpy as jnp
from jax import lax
from jax.experimental import pallas as pl
from jax.experimental.pallas import tpu as pltpu


# ---------------------------------------------------------------- utilities
def _round_up(x, m):
    return ((x + m - 1) // m) * m


def _pad2d(x, rows, cols):
    pr, pc = rows - x.shape[0], cols - x.shape[1]
    if pr == 0 and pc == 0:
        return x
    return jnp.pad(x, ((0, pr), (0, pc)))


def _sublane(dtype):
    """Packed sublane multiple for a dtype (8 f32, 16 bf16, 32 int8/fp8)."""
    return {4: 8, 2: 16, 1: 32}.get(jnp.dtype(dtype).itemsize, 8)


# ------------------------------------------------------- single-step kernel
def _rnn_cell_kernel(d_ref, h_ref, wd_ref, wh_ref, bi_ref, wo_ref, bo_ref,
                     hid_ref, out_ref):
    # i2h: split matmul == Linear(cat(data, last_hidden)); f32 accumulation.
    h = (jnp.dot(d_ref[...], wd_ref[...], preferred_element_type=jnp.float32)
         + jnp.dot(h_ref[...], wh_ref[...], preferred_element_type=jnp.float32)
         + bi_ref[...].astype(jnp.float32))
    h_store = h.astype(hid_ref.dtype)
    hid_ref[...] = h_store
    # h2o uses the stored (rounded) hidden so the returned hidden and the
    # hidden fed to the output layer are consistent (PyTorch semantics).
    o = (jnp.dot(h_store.astype(wo_ref.dtype), wo_ref[...],
                 preferred_element_type=jnp.float32)
         + bo_ref[...].astype(jnp.float32))
    out_ref[...] = o.astype(out_ref.dtype)
    # TODO(synk): no nonlinearity between i2h and h2o, matching the reference
    # module exactly (it is concat->Linear->Linear, not nn.RNN's tanh cell).


def rnn_forward(data, last_hidden, w_i2h, b_i2h, w_h2o, b_h2o,
                *, compute_dtype=None, tm_cap=256):
    """Pallas implementation of RNN.forward(data, last_hidden)->(hidden, output).

    data:        (B, data_size)
    last_hidden: (B, hidden_size)
    w_i2h:       (data_size + hidden_size, hidden_size)   [torch W.T layout]
    b_i2h:       (hidden_size,)
    w_h2o:       (hidden_size, output_size)               [torch W.T layout]
    b_h2o:       (output_size,)
    """
    B, D = data.shape
    H = w_i2h.shape[1]
    O = w_h2o.shape[1]
    out_dtype = data.dtype
    cdt = compute_dtype or data.dtype

    # Split the i2h weight at the data/hidden boundary (== concat matmul).
    w_d = w_i2h[:D, :]
    w_h = w_i2h[D:, :]

    D_pad = _round_up(D, 128)
    H_pad = _round_up(H, 128)
    O_pad = _round_up(O, 128)
    sub = _sublane(cdt)
    TM = min(_round_up(B, sub), _round_up(tm_cap, sub))
    B_pad = _round_up(B, TM)
    n_bt = B_pad // TM

    d_p = _pad2d(data, B_pad, D_pad).astype(cdt)
    h_p = _pad2d(last_hidden, B_pad, H_pad).astype(cdt)
    wd_p = _pad2d(w_d, D_pad, H_pad).astype(cdt)
    wh_p = _pad2d(w_h, H_pad, H_pad).astype(cdt)
    wo_p = _pad2d(w_h2o, H_pad, O_pad).astype(cdt)
    bi_p = _pad2d(b_i2h.reshape(1, H), 1, H_pad).astype(jnp.float32)
    bo_p = _pad2d(b_h2o.reshape(1, O), 1, O_pad).astype(jnp.float32)

    hidden_p, output_p = pl.pallas_call(
        _rnn_cell_kernel,
        out_shape=(
            jax.ShapeDtypeStruct((B_pad, H_pad), out_dtype),
            jax.ShapeDtypeStruct((B_pad, O_pad), out_dtype),
        ),
        grid=(n_bt,),
        in_specs=[
            pl.BlockSpec((TM, D_pad), lambda i: (i, 0)),
            pl.BlockSpec((TM, H_pad), lambda i: (i, 0)),
            pl.BlockSpec((D_pad, H_pad), lambda i: (0, 0)),   # resident weight
            pl.BlockSpec((H_pad, H_pad), lambda i: (0, 0)),   # resident weight
            pl.BlockSpec((1, H_pad), lambda i: (0, 0)),
            pl.BlockSpec((H_pad, O_pad), lambda i: (0, 0)),   # resident weight
            pl.BlockSpec((1, O_pad), lambda i: (0, 0)),
        ],
        out_specs=(
            pl.BlockSpec((TM, H_pad), lambda i: (i, 0)),
            pl.BlockSpec((TM, O_pad), lambda i: (i, 0)),
        ),
        compiler_params=pltpu.CompilerParams(
            dimension_semantics=("parallel",)),
    )(d_p, h_p, wd_p, wh_p, bi_p, wo_p, bo_p)

    return hidden_p[:B, :H], output_p[:B, :O]


# ------------------------------------------------ dense projection (matmul+b)
def _proj_kernel(x_ref, w_ref, b_ref, o_ref):
    o_ref[...] = (jnp.dot(x_ref[...], w_ref[...],
                          preferred_element_type=jnp.float32)
                  + b_ref[...].astype(jnp.float32)).astype(o_ref.dtype)


def _project(x_p, w_p, b_p, out_dtype, *, tm_cap=512):
    """y = x_p @ w_p + b_p for already-padded operands (lane-dense blocks)."""
    M, K = x_p.shape
    N = w_p.shape[1]
    TMm = min(_round_up(M, 8), _round_up(tm_cap, 8))
    M_pad = _round_up(M, TMm)
    if M_pad != M:
        x_p = jnp.pad(x_p, ((0, M_pad - M), (0, 0)))
    y = pl.pallas_call(
        _proj_kernel,
        out_shape=jax.ShapeDtypeStruct((M_pad, N), out_dtype),
        grid=(M_pad // TMm,),
        in_specs=[
            pl.BlockSpec((TMm, K), lambda i: (i, 0)),
            pl.BlockSpec((K, N), lambda i: (0, 0)),       # resident weight
            pl.BlockSpec((1, N), lambda i: (0, 0)),
        ],
        out_specs=pl.BlockSpec((TMm, N), lambda i: (i, 0)),
        compiler_params=pltpu.CompilerParams(
            dimension_semantics=("parallel",)),
    )(x_p, w_p, b_p)
    return y[:M]


# ------------------------------------------- fused recurrence (Tt steps/iter)
def _rnn_recur_kernel(x_ref, h0_ref, wh_ref, hid_ref, h_scr, *, tt):
    tb = pl.program_id(1)

    @pl.when(tb == 0)
    def _():
        h_scr[...] = h0_ref[...].astype(h_scr.dtype)

    def body(i, carry):
        h_prev = h_scr[...]
        # Per-step serial work is exactly one (TM,H)x(H,H) matmul + add; the
        # data projection and the h2o projection live outside this kernel.
        h = (x_ref[i].astype(jnp.float32)
             + jnp.dot(h_prev.astype(wh_ref.dtype), wh_ref[...],
                       preferred_element_type=jnp.float32))
        h_store = h.astype(hid_ref.dtype)
        hid_ref[i] = h_store
        h_scr[...] = h_store       # carry the *rounded* hidden (matches
        return carry               # repeated single-step semantics)

    lax.fori_loop(0, tt, body, 0, unroll=True)


def rnn_forward_sequence(data_seq, h0, w_i2h, b_i2h, w_h2o, b_h2o,
                         *, compute_dtype=None, tm_cap=256, time_block=8):
    """Applies RNN.forward over a sequence (T, B, D).

    Returns (hidden_seq (T,B,H), output_seq (T,B,O)) — same per-step math as
    calling rnn_forward T times, but with the data/h2o projections hoisted out
    of the serial recurrence and multiple time steps blocked per grid step.
    """
    T, B, D = data_seq.shape
    H = w_i2h.shape[1]
    O = w_h2o.shape[1]
    out_dtype = data_seq.dtype
    cdt = compute_dtype or data_seq.dtype

    w_d = w_i2h[:D, :]
    w_h = w_i2h[D:, :]

    D_pad = _round_up(D, 128)
    H_pad = _round_up(H, 128)
    O_pad = _round_up(O, 128)
    sub = _sublane(cdt)
    TM = min(_round_up(B, sub), _round_up(tm_cap, sub))
    B_pad = _round_up(B, TM)
    n_bt = B_pad // TM

    Tt = max(1, min(time_block, T))        # time steps per grid iteration
    T_pad = _round_up(T, Tt)
    n_tt = T_pad // Tt

    # TODO(synk): for very large T*B, fuse this pad+cast with the producer to
    # avoid an extra HBM round-trip of data_seq; negligible at demo shapes.
    d_p = jnp.pad(data_seq,
                  ((0, T_pad - T), (0, B_pad - B), (0, D_pad - D))).astype(cdt)
    h0_p = _pad2d(h0, B_pad, H_pad).astype(cdt)
    wd_p = _pad2d(w_d, D_pad, H_pad).astype(cdt)
    wh_p = _pad2d(w_h, H_pad, H_pad).astype(cdt)
    wo_p = _pad2d(w_h2o, H_pad, O_pad).astype(cdt)
    bi_p = _pad2d(b_i2h.reshape(1, H), 1, H_pad).astype(jnp.float32)
    bo_p = _pad2d(b_h2o.reshape(1, O), 1, O_pad).astype(jnp.float32)

    # Phase 1: X = data @ W_d + b_i2h  (one large MXU-dense matmul, f32 out).
    x_flat = _project(d_p.reshape(T_pad * B_pad, D_pad), wd_p, bi_p,
                      jnp.float32)
    x_p = x_flat.reshape(T_pad, B_pad, H_pad)

    # Phase 2: serial recurrence with Tt steps per grid iteration; hidden
    # state carried in VMEM scratch, W_h resident across the whole grid.
    hid_p = pl.pallas_call(
        functools.partial(_rnn_recur_kernel, tt=Tt),
        out_shape=jax.ShapeDtypeStruct((T_pad, B_pad, H_pad), out_dtype),
        grid=(n_bt, n_tt),
        in_specs=[
            pl.BlockSpec((Tt, TM, H_pad), lambda b, t: (t, b, 0)),
            pl.BlockSpec((TM, H_pad), lambda b, t: (b, 0)),
            pl.BlockSpec((H_pad, H_pad), lambda b, t: (0, 0)),   # resident
        ],
        out_specs=pl.BlockSpec((Tt, TM, H_pad), lambda b, t: (t, b, 0)),
        scratch_shapes=[pltpu.VMEM((TM, H_pad), out_dtype)],
        compiler_params=pltpu.CompilerParams(
            dimension_semantics=("parallel", "arbitrary")),
    )(x_p, h0_p, wh_p)

    # Phase 3: out = hid @ W_o + b_h2o  (one large MXU-dense matmul).
    out_flat = _project(hid_p.reshape(T_pad * B_pad, H_pad).astype(cdt),
                        wo_p, bo_p, out_dtype)
    out_p = out_flat.reshape(T_pad, B_pad, O_pad)

    return hid_p[:T, :B, :H], out_p[:T, :B, :O]


# ----------------------------------------------------------------- init
def init_params(key, data_size, hidden_size, output_size, dtype=jnp.float32):
    """Deterministic init mimicking nn.Linear's U(-1/sqrt(in), 1/sqrt(in))."""
    input_size = data_size + hidden_size
    k1, k2, k3, k4 = jax.random.split(key, 4)
    lim_i = 1.0 / jnp.sqrt(input_size)
    lim_o = 1.0 / jnp.sqrt(hidden_size)
    w_i2h = jax.random.uniform(k1, (input_size, hidden_size), dtype, -lim_i, lim_i)
    b_i2h = jax.random.uniform(k2, (hidden_size,), dtype, -lim_i, lim_i)
    w_h2o = jax.random.uniform(k3, (hidden_size, output_size), dtype, -lim_o, lim_o)
    b_h2o = jax.random.uniform(k4, (output_size,), dtype, -lim_o, lim_o)
    return w_i2h, b_i2h, w_h2o, b_h2o


# ----------------------------------------------------------------- demo
if __name__ == "__main__":
    batch = 10          # matches the module's batch_size
    data_size = 28
    hidden_size = 20    # matches hidden = torch.zeros(batch, 20)
    output_size = 10
    seq_len = 6

    key = jax.random.PRNGKey(0)
    kd, ks, kp = jax.random.split(key, 3)
    data = jax.random.normal(kd, (batch, data_size), jnp.float32)
    last_hidden = jnp.zeros((batch, hidden_size), jnp.float32)
    w_i2h, b_i2h, w_h2o, b_h2o = init_params(kp, data_size, hidden_size, output_size)

    # ---- single step (== RNN.forward) in float32 ----
    hidden, output = rnn_forward(data, last_hidden, w_i2h, b_i2h, w_h2o, b_h2o)
    jax.block_until_ready((hidden, output))

    x = jnp.concatenate([data, last_hidden], axis=1)
    hid_ref = x @ w_i2h + b_i2h
    out_ref = hid_ref @ w_h2o + b_h2o
    assert hidden.shape == (batch, hidden_size) and output.shape == (batch, output_size)
    assert jnp.allclose(hidden, hid_ref, atol=1e-4, rtol=1e-4), "hidden mismatch"
    assert jnp.allclose(output, out_ref, atol=1e-4, rtol=1e-4), "output mismatch"

    # ---- bf16 MXU fast path (v6e/v7x); accumulation stays f32 ----
    hid_bf, out_bf = rnn_forward(data, last_hidden, w_i2h, b_i2h, w_h2o, b_h2o,
                                 compute_dtype=jnp.bfloat16)
    jax.block_until_ready((hid_bf, out_bf))
    assert jnp.allclose(hid_bf, hid_ref, atol=3e-2, rtol=3e-2), "bf16 hidden mismatch"
    assert jnp.allclose(out_bf, out_ref, atol=3e-2, rtol=3e-2), "bf16 output mismatch"

    # ---- fused recurrence: hoisted projections + time-blocked serial loop ----
    data_seq = jax.random.normal(ks, (seq_len, batch, data_size), jnp.float32)

    def step(h, d):
        xx = jnp.concatenate([d, h], axis=1)
        hn = xx @ w_i2h + b_i2h
        return hn, (hn, hn @ w_h2o + b_h2o)
    _, (hid_seq_ref, out_seq_ref) = jax.lax.scan(step, last_hidden, data_seq)

    # (a) all T steps in one grid iteration
    hid_seq, out_seq = rnn_forward_sequence(data_seq, last_hidden,
                                            w_i2h, b_i2h, w_h2o, b_h2o)
    jax.block_until_ready((hid_seq, out_seq))
    assert jnp.allclose(hid_seq, hid_seq_ref, atol=5e-4, rtol=5e-4), "seq hidden mismatch"
    assert jnp.allclose(out_seq, out_seq_ref, atol=5e-4, rtol=5e-4), "seq output mismatch"

    # (b) smaller time block -> exercises the multi-grid-step carried hidden
    hid_seq2, out_seq2 = rnn_forward_sequence(data_seq, last_hidden,
                                              w_i2h, b_i2h, w_h2o, b_h2o,
                                              time_block=4)
    jax.block_until_ready((hid_seq2, out_seq2))
    assert jnp.allclose(hid_seq2, hid_seq_ref, atol=5e-4, rtol=5e-4), "seq(tb=4) hidden mismatch"
    assert jnp.allclose(out_seq2, out_seq_ref, atol=5e-4, rtol=5e-4), "seq(tb=4) output mismatch"

    print("KERNEL_OK")
</pallas_src>

<mosaic_0001>
module attributes {stable_mosaic.version = 11 : i64} {
  func.func @_rnn_cell_kernel(%arg0: i32, %arg1: memref<16x128xf32, #tpu.memory_space<vmem>>, %arg2: memref<16x128xf32, #tpu.memory_space<vmem>>, %arg3: memref<128x128xf32, #tpu.memory_space<vmem>>, %arg4: memref<128x128xf32, #tpu.memory_space<vmem>>, %arg5: memref<1x128xf32, #tpu.memory_space<vmem>>, %arg6: memref<128x128xf32, #tpu.memory_space<vmem>>, %arg7: memref<1x128xf32, #tpu.memory_space<vmem>>, %arg8: memref<16x128xf32, #tpu.memory_space<vmem>>, %arg9: memref<16x128xf32, #tpu.memory_space<vmem>>) attributes {dimension_semantics = [#tpu.dimension_semantics<parallel>], iteration_bounds = array<i64: 1>, scalar_prefetch = 0 : i64, scratch_operands = 0 : i64, tpu.core_type = #tpu.core_type<tc>, window_params = [{transform_indices = @transform_0, window_bounds = array<i64: 16, 128>}, {transform_indices = @transform_1, window_bounds = array<i64: 16, 128>}, {pipeline_mode = #tpu.pipeline_mode<synchronous>, transform_indices = @transform_2, window_bounds = array<i64: 128, 128>}, {pipeline_mode = #tpu.pipeline_mode<synchronous>, transform_indices = @transform_3, window_bounds = array<i64: 128, 128>}, {pipeline_mode = #tpu.pipeline_mode<synchronous>, transform_indices = @transform_4, window_bounds = array<i64: 1, 128>}, {pipeline_mode = #tpu.pipeline_mode<synchronous>, transform_indices = @transform_5, window_bounds = array<i64: 128, 128>}, {pipeline_mode = #tpu.pipeline_mode<synchronous>, transform_indices = @transform_6, window_bounds = array<i64: 1, 128>}, {transform_indices = @transform_7, window_bounds = array<i64: 16, 128>}, {transform_indices = @transform_8, window_bounds = array<i64: 16, 128>}]} {
    %c0 = arith.constant 0 : index
    %c0_0 = arith.constant 0 : index
    %0 = vector.load %arg1[%c0, %c0_0] : memref<16x128xf32, #tpu.memory_space<vmem>>, vector<16x128xf32>
    %c0_1 = arith.constant 0 : index
    %c0_2 = arith.constant 0 : index
    %1 = vector.load %arg3[%c0_1, %c0_2] : memref<128x128xf32, #tpu.memory_space<vmem>>, vector<128x128xf32>
    %cst = arith.constant dense<0.000000e+00> : vector<16x128xf32>
    %2 = tpu.matmul %0, %1, %cst {dimension_numbers = #tpu.dot_dimension_numbers<[1], [0], [0], [1], [0, 0, 1, 1], [], []>} : vector<16x128xf32>, vector<128x128xf32>, vector<16x128xf32> -> vector<16x128xf32>
    %c0_3 = arith.constant 0 : index
    %c0_4 = arith.constant 0 : index
    %3 = vector.load %arg2[%c0_3, %c0_4] : memref<16x128xf32, #tpu.memory_space<vmem>>, vector<16x128xf32>
    %c0_5 = arith.constant 0 : index
    %c0_6 = arith.constant 0 : index
    %4 = vector.load %arg4[%c0_5, %c0_6] : memref<128x128xf32, #tpu.memory_space<vmem>>, vector<128x128xf32>
    %cst_7 = arith.constant dense<0.000000e+00> : vector<16x128xf32>
    %5 = tpu.matmul %3, %4, %cst_7 {dimension_numbers = #tpu.dot_dimension_numbers<[1], [0], [0], [1], [0, 0, 1, 1], [], []>} : vector<16x128xf32>, vector<128x128xf32>, vector<16x128xf32> -> vector<16x128xf32>
    %6 = arith.addf %2, %5 : vector<16x128xf32>
    %c0_8 = arith.constant 0 : index
    %c0_9 = arith.constant 0 : index
    %7 = vector.load %arg5[%c0_8, %c0_9] : memref<1x128xf32, #tpu.memory_space<vmem>>, vector<1x128xf32>
    %8 = vector.broadcast %7 : vector<1x128xf32> to vector<16x128xf32>
    %9 = arith.addf %6, %8 : vector<16x128xf32>
    %c0_10 = arith.constant 0 : index
    %c0_11 = arith.constant 0 : index
    %10 = vector.load %arg8[%c0_10, %c0_11] : memref<16x128xf32, #tpu.memory_space<vmem>>, vector<16x128xf32>
    tpu.vector_store %arg8[%c0_10, %c0_11], %9 {strides = array<i32>} : memref<16x128xf32, #tpu.memory_space<vmem>>, vector<16x128xf32>,
    %c0_12 = arith.constant 0 : index
    %c0_13 = arith.constant 0 : index
    %11 = vector.load %arg6[%c0_12, %c0_13] : memref<128x128xf32, #tpu.memory_space<vmem>>, vector<128x128xf32>
    %cst_14 = arith.constant dense<0.000000e+00> : vector<16x128xf32>
    %12 = tpu.matmul %9, %11, %cst_14 {dimension_numbers = #tpu.dot_dimension_numbers<[1], [0], [0], [1], [0, 0, 1, 1], [], []>} : vector<16x128xf32>, vector<128x128xf32>, vector<16x128xf32> -> vector<16x128xf32>
    %c0_15 = arith.constant 0 : index
    %c0_16 = arith.constant 0 : index
    %13 = vector.load %arg7[%c0_15, %c0_16] : memref<1x128xf32, #tpu.memory_space<vmem>>, vector<1x128xf32>
    %14 = vector.broadcast %13 : vector<1x128xf32> to vector<16x128xf32>
    %15 = arith.addf %12, %14 : vector<16x128xf32>
    %c0_17 = arith.constant 0 : index
    %c0_18 = arith.constant 0 : index
    %16 = vector.load %arg9[%c0_17, %c0_18] : memref<16x128xf32, #tpu.memory_space<vmem>>, vector<16x128xf32>
    tpu.vector_store %arg9[%c0_17, %c0_18], %15 {strides = array<i32>} : memref<16x128xf32, #tpu.memory_space<vmem>>, vector<16x128xf32>,
    return
  }
  func.func @transform_0(%arg0: i32) -> (i32, i32) {
    %c0_i32 = arith.constant 0 : i32
    %c0_i32_0 = arith.constant 0 : i32
    return %arg0, %c0_i32 : i32, i32
  }
  func.func @transform_1(%arg0: i32) -> (i32, i32) {
    %c0_i32 = arith.constant 0 : i32
    %c0_i32_0 = arith.constant 0 : i32
    return %arg0, %c0_i32 : i32, i32
  }
  func.func @transform_2(%arg0: i32) -> (i32, i32) {
    %c0_i32 = arith.constant 0 : i32
    %c0_i32_0 = arith.constant 0 : i32
    %c0_i32_1 = arith.constant 0 : i32
    return %c0_i32, %c0_i32_0 : i32, i32
  }
  func.func @transform_3(%arg0: i32) -> (i32, i32) {
    %c0_i32 = arith.constant 0 : i32
    %c0_i32_0 = arith.constant 0 : i32
    %c0_i32_1 = arith.constant 0 : i32
    return %c0_i32, %c0_i32_0 : i32, i32
  }
  func.func @transform_4(%arg0: i32) -> (i32, i32) {
    %c0_i32 = arith.constant 0 : i32
    %c0_i32_0 = arith.constant 0 : i32
    %c0_i32_1 = arith.constant 0 : i32
    return %c0_i32, %c0_i32_0 : i32, i32
  }
  func.func @transform_5(%arg0: i32) -> (i32, i32) {
    %c0_i32 = arith.constant 0 : i32
    %c0_i32_0 = arith.constant 0 : i32
    %c0_i32_1 = arith.constant 0 : i32
    return %c0_i32, %c0_i32_0 : i32, i32
  }
  func.func @transform_6(%arg0: i32) -> (i32, i32) {
    %c0_i32 = arith.constant 0 : i32
    %c0_i32_0 = arith.constant 0 : i32
    %c0_i32_1 = arith.constant 0 : i32
    return %c0_i32, %c0_i32_0 : i32, i32
  }
  func.func @transform_7(%arg0: i32) -> (i32, i32) {
    %c0_i32 = arith.constant 0 : i32
    %c0_i32_0 = arith.constant 0 : i32
    return %arg0, %c0_i32 : i32, i32
  }
  func.func @transform_8(%arg0: i32) -> (i32, i32) {
    %c0_i32 = arith.constant 0 : i32
    %c0_i32_0 = arith.constant 0 : i32
    return %arg0, %c0_i32 : i32, i32
  }
}

</mosaic_0001>

<llo_original>
// kernel: tpu_custom_call.1
$region0: #{tpu_custom_call.1}
  #allocation0 [shape = 'u32[]', space=smem, size = 0x4, offset = 0x4, fixed_abs, tag = 'smem constant byte address 0x4 - core index']
  #allocation1 [shape = 'u32[144,128]{1,0:T(1,128)}', space=vmem, size = 0x12000, scoped, tag = 'internal scratch']
  %s0 = inlined_call_operand.hbm [shape: f32[16,128], index: 0, kind: input, shape index: {}]
  %s1 = inlined_call_operand.hbm [shape: f32[16,128], index: 1, kind: input, shape index: {}]
  %s2 = inlined_call_operand.hbm [shape: f32[128,128], index: 2, kind: input, shape index: {}]
  %s3 = inlined_call_operand.hbm [shape: f32[128,128], index: 3, kind: input, shape index: {}]
  %s4 = inlined_call_operand.vmem [shape: f32[1,128], index: 4, kind: input, shape index: {}]
  %s5 = inlined_call_operand.hbm [shape: f32[128,128], index: 5, kind: input, shape index: {}]
  %s6 = inlined_call_operand.vmem [shape: f32[1,128], index: 6, kind: input, shape index: {}]
  %s7 = inlined_call_operand.hbm [shape: f32[16,128], index: 7, kind: output, shape index: {0}]
  %s8 = inlined_call_operand.hbm [shape: f32[16,128], index: 8, kind: output, shape index: {1}]
  %9 = xla_tuple %s7, %s8
  %s10 = sld [smem:[#allocation0]]
  $region66: #{tpu_custom_call.1} parent=0
    _
  %s12 = ssub.s32 1, %s10
  %s13 = scalar_select 0, %s12, %s10
  $region1: #{tpu_custom_call.1} parent=0
    #allocation2 [shape = 'u8[8192]{0}', space=vmem, size = 0x2000, scoped, tag = 'input window, operand 0, single buffered']
    #allocation3 [shape = 's32[1]{0}', space=sflag, size = 0x4, scoped, tag = 'scoped memory for tpu_custom_call.1']
    #allocation4 [shape = 's32[1]{0}', space=sflag, size = 0x4, scoped, tag = 'scoped memory for tpu_custom_call.1']
    #allocation5 [shape = 'u8[8192]{0}', space=vmem, size = 0x2000, scoped, tag = 'input window, operand 1, single buffered']
    #allocation6 [shape = 's32[1]{0}', space=sflag, size = 0x4, scoped, tag = 'scoped memory for tpu_custom_call.1']
    #allocation7 [shape = 'u8[65536]{0}', space=vmem, size = 0x10000, scoped, tag = 'input window, operand 2, single buffered']
    #allocation8 [shape = 'u8[65536]{0}', space=vmem, size = 0x10000, scoped, tag = 'input window, operand 3, single buffered']
    #allocation9 [shape = 's32[1]{0}', space=sflag, size = 0x4, scoped, tag = 'scoped memory for tpu_custom_call.1']
    #allocation10 [shape = 'u8[65536]{0}', space=vmem, size = 0x10000, scoped, tag = 'input window, operand 5, single buffered']
    #allocation11 [shape = 'u8[8192]{0}', space=vmem, size = 0x2000, scoped, tag = 'output window, operand 0, single buffered']
    #allocation12 [shape = 'u8[8192]{0}', space=vmem, size = 0x2000, scoped, tag = 'output window, operand 1, single buffered']
    #allocation13 [shape = 's32[1]{0}', space=sflag, size = 0x4, scoped, tag = 'scoped memory for tpu_custom_call.1']
    %14 = vsyncpa [#allocation3], 0
    %15 = vsyncpa [#allocation6], 0
    %16 = vsyncpa [#allocation9], 0
    %17 = vsyncpa [#allocation4], 0
    %18 = vsyncpa [#allocation13], 0
    // Predicated region
    $region2: #{tpu_custom_call.1} parent=1 // pred_check
      _
    $region3: #{tpu_custom_call.1} parent=1 // pred_check_branch
      %20 = sbr.rel (0) target = $region5
    $region4: #{tpu_custom_call.1} parent=1 // pred_region
      %s22 = ssub.s32 256, 256
      %23 = vsyncadd [#allocation3], %s22
      %s24 = sshll.u32 [#allocation2], 4
      %s25 = int_to_ptr.vmem [resolvable:$true] %s24
      %30 = dma.hbm_to_vmem [thread:$0]  %s0, 256, %s25, [#allocation3], 128, 128, 8
    $region5: #{tpu_custom_call.1} parent=1 // pred_fallthru
      _
    // Predicated region
    $region6: #{tpu_custom_call.1} parent=1 // pred_check
      _
    $region7: #{tpu_custom_call.1} parent=1 // pred_check_branch
      %32 = sbr.rel (0) target = $region9
    $region8: #{tpu_custom_call.1} parent=1 // pred_region
      %s34 = ssub.s32 256, 256
      %35 = vsyncadd [#allocation6], %s34
      %s36 = sshll.u32 [#allocation5], 4
      %s37 = int_to_ptr.vmem [resolvable:$true] %s36
      %42 = dma.hbm_to_vmem [thread:$0]  %s1, 256, %s37, [#allocation6], 128, 128, 8
    $region9: #{tpu_custom_call.1} parent=1 // pred_fallthru
      _
    // Predicated region
    $region10: #{tpu_custom_call.1} parent=1 // pred_check
      _
    $region11: #{tpu_custom_call.1} parent=1 // pred_check_branch
      %44 = sbr.rel (0) target = $region13
    $region12: #{tpu_custom_call.1} parent=1 // pred_region
      %s46 = ssub.s32 2048, 2048
      %47 = vsyncadd [#allocation6], %s46
      %s48 = sshll.u32 [#allocation7], 4
      %s49 = int_to_ptr.vmem [resolvable:$true] %s48
      %54 = dma.hbm_to_vmem [thread:$0]  %s2, 2048, %s49, [#allocation6], 128, 128, 8
    $region13: #{tpu_custom_call.1} parent=1 // pred_fallthru
      _
    // Predicated region
    $region14: #{tpu_custom_call.1} parent=1 // pred_check
      _
    $region15: #{tpu_custom_call.1} parent=1 // pred_check_branch
      %56 = sbr.rel (0) target = $region17
    $region16: #{tpu_custom_call.1} parent=1 // pred_region
      %s58 = ssub.s32 2048, 2048
      %59 = vsyncadd [#allocation9], %s58
      %s60 = sshll.u32 [#allocation8], 4
      %s61 = int_to_ptr.vmem [resolvable:$true] %s60
      %66 = dma.hbm_to_vmem [thread:$0]  %s3, 2048, %s61, [#allocation9], 128, 128, 8
    $region17: #{tpu_custom_call.1} parent=1 // pred_fallthru
      _
    // Predicated region
    $region18: #{tpu_custom_call.1} parent=1 // pred_check
      _
    $region19: #{tpu_custom_call.1} parent=1 // pred_check_branch
      %68 = sbr.rel (0) target = $region21
    $region20: #{tpu_custom_call.1} parent=1 // pred_region
      _
    $region21: #{tpu_custom_call.1} parent=1 // pred_fallthru
      _
    // Predicated region
    $region22: #{tpu_custom_call.1} parent=1 // pred_check
      _
    $region23: #{tpu_custom_call.1} parent=1 // pred_check_branch
      %70 = sbr.rel (0) target = $region25
    $region24: #{tpu_custom_call.1} parent=1 // pred_region
      %s72 = ssub.s32 2048, 2048
      %73 = vsyncadd [#allocation9], %s72
      %s74 = sshll.u32 [#allocation10], 4
      %s75 = int_to_ptr.vmem [resolvable:$true] %s74
      %80 = dma.hbm_to_vmem [thread:$0]  %s5, 2048, %s75, [#allocation9], 128, 128, 8
    $region25: #{tpu_custom_call.1} parent=1 // pred_fallthru
      _
    // Predicated region
    $region26: #{tpu_custom_call.1} parent=1 // pred_check
      _
    $region27: #{tpu_custom_call.1} parent=1 // pred_check_branch
      %82 = sbr.rel (0) target = $region29
    $region28: #{tpu_custom_call.1} parent=1 // pred_region
      _
    $region29: #{tpu_custom_call.1} parent=1 // pred_fallthru
      _
    // Predicated region
    $region30: #{tpu_custom_call.1} parent=1 // pred_check
      _
    $region31: #{tpu_custom_call.1} parent=1 // pred_check_branch
      %84 = sbr.rel (0) target = $region33
    $region32: #{tpu_custom_call.1} parent=1 // pred_region
      %85 = dma.done [#allocation3], 256
    $region33: #{tpu_custom_call.1} parent=1 // pred_fallthru
      _
    // Predicated region
    $region34: #{tpu_custom_call.1} parent=1 // pred_check
      _
    $region35: #{tpu_custom_call.1} parent=1 // pred_check_branch
      %87 = sbr.rel (0) target = $region37
    $region36: #{tpu_custom_call.1} parent=1 // pred_region
      %88 = dma.done [#allocation6], 256
    $region37: #{tpu_custom_call.1} parent=1 // pred_fallthru
      _
    // Predicated region
    $region38: #{tpu_custom_call.1} parent=1 // pred_check
      _
    $region39: #{tpu_custom_call.1} parent=1 // pred_check_branch
      %90 = sbr.rel (0) target = $region41
    $region40: #{tpu_custom_call.1} parent=1 // pred_region
      %91 = dma.done [#allocation6], 2048
    $region41: #{tpu_custom_call.1} parent=1 // pred_fallthru
      _
    // Predicated region
    $region42: #{tpu_custom_call.1} parent=1 // pred_check
      _
    $region43: #{tpu_custom_call.1} parent=1 // pred_check_branch
      %93 = sbr.rel (0) target = $region45
    $region44: #{tpu_custom_call.1} parent=1 // pred_region
      %94 = dma.done [#allocation9], 2048
    $region45: #{tpu_custom_call.1} parent=1 // pred_fallthru
      _
    // Predicated region
    $region46: #{tpu_custom_call.1} parent=1 // pred_check
      _
    $region47: #{tpu_custom_call.1} parent=1 // pred_check_branch
      %96 = sbr.rel (0) target = $region49
    $region48: #{tpu_custom_call.1} parent=1 // pred_region
      %97 = dma.done [#allocation9], 2048
    $region49: #{tpu_custom_call.1} parent=1 // pred_fallthru
      _
    %v98 = vld [vmem:[#allocation2] sm:$0xff]
    %v99 = vld [vmem:[#allocation2 + $0x8] sm:$0xff]
    %v100 = vld [vmem:[#allocation7] sm:$0xff]
    %v101 = vld [vmem:[#allocation7 + $0x8] sm:$0xff]
    %v102 = vld [vmem:[#allocation7 + $0x10] sm:$0xff]
    %v103 = vld [vmem:[#allocation7 + $0x18] sm:$0xff]
    %v104 = vld [vmem:[#allocation7 + $0x20] sm:$0xff]
    %v105 = vld [vmem:[#allocation7 + $0x28] sm:$0xff]
    %v106 = vld [vmem:[#allocation7 + $0x30] sm:$0xff]
    %v107 = vld [vmem:[#allocation7 + $0x38] sm:$0xff]
    %v108 = vld [vmem:[#allocation7 + $0x40] sm:$0xff]
    %v109 = vld [vmem:[#allocation7 + $0x48] sm:$0xff]
    %v110 = vld [vmem:[#allocation7 + $0x50] sm:$0xff]
    %v111 = vld [vmem:[#allocation7 + $0x58] sm:$0xff]
    %v112 = vld [vmem:[#allocation7 + $0x60] sm:$0xff]
    %v113 = vld [vmem:[#allocation7 + $0x68] sm:$0xff]
    %v114 = vld [vmem:[#allocation7 + $0x70] sm:$0xff]
    %v115 = vld [vmem:[#allocation7 + $0x78] sm:$0xff]
    %v116 = vld [vmem:[#allocation5] sm:$0xff]
    %v117 = vld [vmem:[#allocation5 + $0x8] sm:$0xff]
    %v118 = vld [vmem:[#allocation8] sm:$0xff]
    %v119 = vld [vmem:[#allocation8 + $0x8] sm:$0xff]
    %v120 = vld [vmem:[#allocation8 + $0x10] sm:$0xff]
    %v121 = vld [vmem:[#allocation8 + $0x18] sm:$0xff]
    %v122 = vld [vmem:[#allocation8 + $0x20] sm:$0xff]
    %v123 = vld [vmem:[#allocation8 + $0x28] sm:$0xff]
    %v124 = vld [vmem:[#allocation8 + $0x30] sm:$0xff]
    %v125 = vld [vmem:[#allocation8 + $0x38] sm:$0xff]
    %v126 = vld [vmem:[#allocation8 + $0x40] sm:$0xff]
    %v127 = vld [vmem:[#allocation8 + $0x48] sm:$0xff]
    %v128 = vld [vmem:[#allocation8 + $0x50] sm:$0xff]
    %v129 = vld [vmem:[#allocation8 + $0x58] sm:$0xff]
    %v130 = vld [vmem:[#allocation8 + $0x60] sm:$0xff]
    %v131 = vld [vmem:[#allocation8 + $0x68] sm:$0xff]
    %v132 = vld [vmem:[#allocation8 + $0x70] sm:$0xff]
    %v133 = vld [vmem:[#allocation8 + $0x78] sm:$0xff]
    %134 = vmatprep.subr.mxu0 0.0
    %135 = vmatpush1.msra.mxu0 %v118
    %136 = vmatprep.subr.mxu0 0.0
    %137 = vmatpush1.msra.mxu0 %v119
    %138 = vmatprep.subr.mxu0 0.0
    %139 = vmatpush1.msra.mxu0 %v120
    %140 = vmatprep.subr.mxu0 0.0
    %141 = vmatpush1.msra.mxu0 %v121
    %142 = vmatprep.subr.mxu0 0.0
    %143 = vmatpush1.msra.mxu0 %v122
    %144 = vmatprep.subr.mxu0 0.0
    %145 = vmatpush1.msra.mxu0 %v123
    %146 = vmatprep.subr.mxu0 0.0
    %147 = vmatpush1.msra.mxu0 %v124
    %148 = vmatprep.subr.mxu0 0.0
    %149 = vmatpush1.msra.mxu0 %v125
    %150 = vmatprep.subr.mxu0 0.0
    %151 = vmatpush1.msra.mxu0 %v126
    %152 = vmatprep.subr.mxu0 0.0
    %153 = vmatpush1.msra.mxu0 %v127
    %154 = vmatprep.subr.mxu0 0.0
    %155 = vmatpush1.msra.mxu0 %v128
    %156 = vmatprep.subr.mxu0 0.0
    %157 = vmatpush1.msra.mxu0 %v129
    %158 = vmatprep.subr.mxu0 0.0
    %159 = vmatpush1.msra.mxu0 %v130
    %160 = vmatprep.subr.mxu0 0.0
    %161 = vmatpush1.msra.mxu0 %v131
    %162 = vmatprep.subr.mxu0 0.0
    %163 = vmatpush1.msra.mxu0 %v132
    %164 = vmatprep.subr.mxu0 0.0
    %165 = vmatpush1.msra.mxu0 %v133
    %166 = vmatprep.subr.mxu0 0.0
    %167 = vmatpush1.msra.mxu0 0.0
    %168 = vmatprep.subr.mxu0 0.0
    %169 = vmatpush1.msra.mxu0 0.0
    %170 = vmatprep.subr.mxu0 0.0
    %171 = vmatpush1.msra.mxu0 0.0
    %172 = vmatprep.subr.mxu0 0.0
    %173 = vmatpush1.msra.mxu0 0.0
    %174 = vmatprep.subr.mxu0 0.0
    %175 = vmatpush1.msra.mxu0 0.0
    %176 = vmatprep.subr.mxu0 0.0
    %177 = vmatpush1.msra.mxu0 0.0
    %178 = vmatprep.subr.mxu0 0.0
    %179 = vmatpush1.msra.mxu0 0.0
    %180 = vmatprep.subr.mxu0 0.0
    %181 = vmatpush1.msra.mxu0 0.0
    %182 = vmatprep.subr.mxu0 0.0
    %183 = vmatpush1.msra.mxu0 0.0
    %184 = vmatprep.subr.mxu0 0.0
    %185 = vmatpush1.msra.mxu0 0.0
    %186 = vmatprep.subr.mxu0 0.0
    %187 = vmatpush1.msra.mxu0 0.0
    %188 = vmatprep.subr.mxu0 0.0
    %189 = vmatpush1.msra.mxu0 0.0
    %190 = vmatprep.subr.mxu0 0.0
    %191 = vmatpush1.msra.mxu0 0.0
    %192 = vmatprep.subr.mxu0 0.0
    %193 = vmatpush1.msra.mxu0 0.0
    %194 = vmatprep.subr.mxu0 0.0
    %195 = vmatpush1.msra.mxu0 0.0
    %196 = vmatprep.subr.mxu0 0.0
    %197 = vmatpush1.msra.mxu0 0.0
    %198 = vmatprep.mubr.f32.mxu0 0.0
    %199 = vmatmul.mubr.f32.gmra.mrb[0].mxu0 %v116
    %v200 = vpop.f32.mrb[0].mxu0
    %v201 = vadd.f32 0.0, %v200
    %v202 = vpop.f32.mrb[0].mxu0
    %203 = vmatprep.mubr.f32.mxu0 0.0
    %204 = vmatmul.mubr.f32.gmra.mrb[0].mxu0 %v117
    %v205 = vpop.f32.mrb[0].mxu0
    %v206 = vadd.f32 0.0, %v205
    %v207 = vpop.f32.mrb[0].mxu0
    %208 = vdwg.mxu0
    %209 = vmatprep.subr.mxu0 0.0
    %210 = vmatpush1.msra.mxu0 %v100
    %211 = vmatprep.subr.mxu0 0.0
    %212 = vmatpush1.msra.mxu0 %v101
    %213 = vmatprep.subr.mxu0 0.0
    %214 = vmatpush1.msra.mxu0 %v102
    %215 = vmatprep.subr.mxu0 0.0
    %216 = vmatpush1.msra.mxu0 %v103
    %217 = vmatprep.subr.mxu0 0.0
    %218 = vmatpush1.msra.mxu0 %v104
    %219 = vmatprep.subr.mxu0 0.0
    %220 = vmatpush1.msra.mxu0 %v105
    %221 = vmatprep.subr.mxu0 0.0
    %222 = vmatpush1.msra.mxu0 %v106
    %223 = vmatprep.subr.mxu0 0.0
    %224 = vmatpush1.msra.mxu0 %v107
    %225 = vmatprep.subr.mxu0 0.0
    %226 = vmatpush1.msra.mxu0 %v108
    %227 = vmatprep.subr.mxu0 0.0
    %228 = vmatpush1.msra.mxu0 %v109
    %229 = vmatprep.subr.mxu0 0.0
    %230 = vmatpush1.msra.mxu0 %v110
    %231 = vmatprep.subr.mxu0 0.0
    %232 = vmatpush1.msra.mxu0 %v111
    %233 = vmatprep.subr.mxu0 0.0
    %234 = vmatpush1.msra.mxu0 %v112
    %235 = vmatprep.subr.mxu0 0.0
    %236 = vmatpush1.msra.mxu0 %v113
    %237 = vmatprep.subr.mxu0 0.0
    %238 = vmatpush1.msra.mxu0 %v114
    %239 = vmatprep.subr.mxu0 0.0
    %240 = vmatpush1.msra.mxu0 %v115
    %241 = vmatprep.subr.mxu0 0.0
    %242 = vmatpush1.msra.mxu0 0.0
    %243 = vmatprep.subr.mxu0 0.0
    %244 = vmatpush1.msra.mxu0 0.0
    %245 = vmatprep.subr.mxu0 0.0
    %246 = vmatpush1.msra.mxu0 0.0
    %247 = vmatprep.subr.mxu0 0.0
    %248 = vmatpush1.msra.mxu0 0.0
    %249 = vmatprep.subr.mxu0 0.0
    %250 = vmatpush1.msra.mxu0 0.0
    %251 = vmatprep.subr.mxu0 0.0
    %252 = vmatpush1.msra.mxu0 0.0
    %253 = vmatprep.subr.mxu0 0.0
    %254 = vmatpush1.msra.mxu0 0.0
    %255 = vmatprep.subr.mxu0 0.0
    %256 = vmatpush1.msra.mxu0 0.0
    %257 = vmatprep.subr.mxu0 0.0
    %258 = vmatpush1.msra.mxu0 0.0
    %259 = vmatprep.subr.mxu0 0.0
    %260 = vmatpush1.msra.mxu0 0.0
    %261 = vmatprep.subr.mxu0 0.0
    %262 = vmatpush1.msra.mxu0 0.0
    %263 = vmatprep.subr.mxu0 0.0
    %264 = vmatpush1.msra.mxu0 0.0
    %265 = vmatprep.subr.mxu0 0.0
    %266 = vmatpush1.msra.mxu0 0.0
    %267 = vmatprep.subr.mxu0 0.0
    %268 = vmatpush1.msra.mxu0 0.0
    %269 = vmatprep.subr.mxu0 0.0
    %270 = vmatpush1.msra.mxu0 0.0
    %271 = vmatprep.subr.mxu0 0.0
    %272 = vmatpush1.msra.mxu0 0.0
    %273 = vmatprep.mubr.f32.mxu0 0.0
    %274 = vmatmul.mubr.f32.gmra.mrb[0].mxu0 %v98
    %v275 = vpop.f32.mrb[0].mxu0
    %v276 = vadd.f32 %v201, %v275
    %v277 = vpop.f32.mrb[0].mxu0
    %278 = vmatprep.mubr.f32.mxu0 0.0
    %279 = vmatmul.mubr.f32.gmra.mrb[0].mxu0 %v99
    %v280 = vpop.f32.mrb[0].mxu0
    %v281 = vadd.f32 %v206, %v280
    %v282 = vpop.f32.mrb[0].mxu0
    %283 = vdwg.mxu0
    %v284 = vld [vmem:[%s4] sm:$0x1]
    %v286 = vlaneseq
    %v287 = vshrl.u32 %v286, 7
    %v288 = vsub.s32 0, %v287
    %v289 = vrot.slane %v284, %v288
    %v291 = vadd.f32 %v276, %v289
    %v292 = vadd.f32 %v281, %v289
    %293 = vst [vmem:[#allocation11] sm:$0xff] %v291
    %294 = vst [vmem:[#allocation11 + $0x8] sm:$0xff] %v292
    %v295 = vld [vmem:[#allocation10] sm:$0xff]
    %v296 = vld [vmem:[#allocation10 + $0x8] sm:$0xff]
    %v297 = vld [vmem:[#allocation10 + $0x10] sm:$0xff]
    %v298 = vld [vmem:[#allocation10 + $0x18] sm:$0xff]
    %v299 = vld [vmem:[#allocation10 + $0x20] sm:$0xff]
    %v300 = vld [vmem:[#allocation10 + $0x28] sm:$0xff]
    %v301 = vld [vmem:[#allocation10 + $0x30] sm:$0xff]
    %v302 = vld [vmem:[#allocation10 + $0x38] sm:$0xff]
    %v303 = vld [vmem:[#allocation10 + $0x40] sm:$0xff]
    %v304 = vld [vmem:[#allocation10 + $0x48] sm:$0xff]
    %v305 = vld [vmem:[#allocation10 + $0x50] sm:$0xff]
    %v306 = vld [vmem:[#allocation10 + $0x58] sm:$0xff]
    %v307 = vld [vmem:[#allocation10 + $0x60] sm:$0xff]
    %v308 = vld [vmem:[#allocation10 + $0x68] sm:$0xff]
    %v309 = vld [vmem:[#allocation10 + $0x70] sm:$0xff]
    %v310 = vld [vmem:[#allocation10 + $0x78] sm:$0xff]
    %v311 = vld [vmem:[%s6] sm:$0x1]
    %v313 = vlaneseq
    %v314 = vshrl.u32 %v313, 7
    %v315 = vsub.s32 0, %v314
    %v316 = vrot.slane %v311, %v315
    %318 = vmatprep.subr.mxu0 0.0
    %319 = vmatpush1.msra.mxu0 %v295
    %320 = vmatprep.subr.mxu0 0.0
    %321 = vmatpush1.msra.mxu0 %v296
    %322 = vmatprep.subr.mxu0 0.0
    %323 = vmatpush1.msra.mxu0 %v297
    %324 = vmatprep.subr.mxu0 0.0
    %325 = vmatpush1.msra.mxu0 %v298
    %326 = vmatprep.subr.mxu0 0.0
    %327 = vmatpush1.msra.mxu0 %v299
    %328 = vmatprep.subr.mxu0 0.0
    %329 = vmatpush1.msra.mxu0 %v300
    %330 = vmatprep.subr.mxu0 0.0
    %331 = vmatpush1.msra.mxu0 %v301
    %332 = vmatprep.subr.mxu0 0.0
    %333 = vmatpush1.msra.mxu0 %v302
    %334 = vmatprep.subr.mxu0 0.0
    %335 = vmatpush1.msra.mxu0 %v303
    %336 = vmatprep.subr.mxu0 0.0
    %337 = vmatpush1.msra.mxu0 %v304
    %338 = vmatprep.subr.mxu0 0.0
    %339 = vmatpush1.msra.mxu0 %v305
    %340 = vmatprep.subr.mxu0 0.0
    %341 = vmatpush1.msra.mxu0 %v306
    %342 = vmatprep.subr.mxu0 0.0
    %343 = vmatpush1.msra.mxu0 %v307
    %344 = vmatprep.subr.mxu0 0.0
    %345 = vmatpush1.msra.mxu0 %v308
    %346 = vmatprep.subr.mxu0 0.0
    %347 = vmatpush1.msra.mxu0 %v309
    %348 = vmatprep.subr.mxu0 0.0
    %349 = vmatpush1.msra.mxu0 %v310
    %350 = vmatprep.subr.mxu0 0.0
    %351 = vmatpush1.msra.mxu0 0.0
    %352 = vmatprep.subr.mxu0 0.0
    %353 = vmatpush1.msra.mxu0 0.0
    %354 = vmatprep.subr.mxu0 0.0
    %355 = vmatpush1.msra.mxu0 0.0
    %356 = vmatprep.subr.mxu0 0.0
    %357 = vmatpush1.msra.mxu0 0.0
    %358 = vmatprep.subr.mxu0 0.0
    %359 = vmatpush1.msra.mxu0 0.0
    %360 = vmatprep.subr.mxu0 0.0
    %361 = vmatpush1.msra.mxu0 0.0
    %362 = vmatprep.subr.mxu0 0.0
    %363 = vmatpush1.msra.mxu0 0.0
    %364 = vmatprep.subr.mxu0 0.0
    %365 = vmatpush1.msra.mxu0 0.0
    %366 = vmatprep.subr.mxu0 0.0
    %367 = vmatpush1.msra.mxu0 0.0
    %368 = vmatprep.subr.mxu0 0.0
    %369 = vmatpush1.msra.mxu0 0.0
    %370 = vmatprep.subr.mxu0 0.0
    %371 = vmatpush1.msra.mxu0 0.0
    %372 = vmatprep.subr.mxu0 0.0
    %373 = vmatpush1.msra.mxu0 0.0
    %374 = vmatprep.subr.mxu0 0.0
    %375 = vmatpush1.msra.mxu0 0.0
    %376 = vmatprep.subr.mxu0 0.0
    %377 = vmatpush1.msra.mxu0 0.0
    %378 = vmatprep.subr.mxu0 0.0
    %379 = vmatpush1.msra.mxu0 0.0
    %380 = vmatprep.subr.mxu0 0.0
    %381 = vmatpush1.msra.mxu0 0.0
    %382 = vmatprep.mubr.f32.mxu0 0.0
    %383 = vmatmul.mubr.f32.gmra.mrb[0].mxu0 %v291
    %v384 = vpop.f32.mrb[0].mxu0
    %v385 = vadd.f32 %v316, %v384
    %v386 = vpop.f32.mrb[0].mxu0
    %387 = vmatprep.mubr.f32.mxu0 0.0
    %388 = vmatmul.mubr.f32.gmra.mrb[0].mxu0 %v292
    %v389 = vpop.f32.mrb[0].mxu0
    %v390 = vadd.f32 %v316, %v389
    %v391 = vpop.f32.mrb[0].mxu0
    %392 = vdwg.mxu0
    %393 = vst [vmem:[#allocation12] sm:$0xff] %v385
    %394 = vst [vmem:[#allocation12 + $0x8] sm:$0xff] %v390
    // Predicated region
    $region50: #{tpu_custom_call.1} parent=1 // pred_check
      _
    $region51: #{tpu_custom_call.1} parent=1 // pred_check_branch
      %396 = sbr.rel (0) target = $region53
    $region52: #{tpu_custom_call.1} parent=1 // pred_region
      %s398 = ssub.s32 256, 256
      %399 = vsyncadd [#allocation4], %s398
      %s400 = sshll.u32 [#allocation11], 4
      %s401 = int_to_ptr.vmem [resolvable:$true] %s400
      %406 = dma.vmem_to_hbm [thread:$0]  %s401, 256, %s7, [#allocation4], 128, 128, 8
    $region53: #{tpu_custom_call.1} parent=1 // pred_fallthru
      _
    // Predicated region
    $region54: #{tpu_custom_call.1} parent=1 // pred_check
      _
    $region55: #{tpu_custom_call.1} parent=1 // pred_check_branch
      %408 = sbr.rel (0) target = $region57
    $region56: #{tpu_custom_call.1} parent=1 // pred_region
      %s410 = ssub.s32 256, 256
      %411 = vsyncadd [#allocation13], %s410
      %s412 = sshll.u32 [#allocation12], 4
      %s413 = int_to_ptr.vmem [resolvable:$true] %s412
      %418 = dma.vmem_to_hbm [thread:$0]  %s413, 256, %s8, [#allocation13], 128, 128, 8
    $region57: #{tpu_custom_call.1} parent=1 // pred_fallthru
      _
    // Predicated region
    $region58: #{tpu_custom_call.1} parent=1 // pred_check
      _
    $region59: #{tpu_custom_call.1} parent=1 // pred_check_branch
      %420 = sbr.rel (0) target = $region61
    $region60: #{tpu_custom_call.1} parent=1 // pred_region
      %421 = dma.done [#allocation4], 256
    $region61: #{tpu_custom_call.1} parent=1 // pred_fallthru
      _
    // Predicated region
    $region62: #{tpu_custom_call.1} parent=1 // pred_check
      _
    $region63: #{tpu_custom_call.1} parent=1 // pred_check_branch
      %423 = sbr.rel (0) target = $region65
    $region64: #{tpu_custom_call.1} parent=1 // pred_region
      %424 = dma.done [#allocation13], 256
    $region65: #{tpu_custom_call.1} parent=1 // pred_fallthru
      _
    %425 = vsyncpa [#allocation3], 1
    %426 = vsyncpa [#allocation6], 1
    %427 = vsyncpa [#allocation9], 1
    %428 = vsyncpa [#allocation4], 1
    %429 = vsyncpa [#allocation13], 1

</llo_original>
